<compile_context>
chip_gen: v7x
topology: tpu7x:2x2x1
jax: 0.10.0
libtpu: 0.0.40
codegen_flags: <defaults>
</compile_context>

<pallas_src>
import functools

import jax
import jax.numpy as jnp
from jax.experimental import pallas as pl
from jax.experimental.pallas import tpu as pltpu


def _round_up(n, m):
    return -(-n // m) * m


# --------------------------------------------------------------------------
# Kernel
# --------------------------------------------------------------------------
def _joiner_kernel(src_ref, tgt_ref, hptr_ref, wb_ref, w_ref, b_ref,
                   out_ref, act_ref, act_m_ref, *, activation):
    # Block shapes for grid point (i, j, o)   [R = TT * U_pad]:
    #   src_ref : (1, TT, D_pad)       tgt_ref : (1, U_pad, D_pad)  (tgt + bb)
    #   hptr_ref: (1, R, A)            wb_ref  : (A, D_pad)
    #   w_ref   : (D_pad, TO)          b_ref   : (1, TO)
    #   out_ref : (1, R, TO)           act_ref : (1, R, D_pad)  (resident over o)
    #   act_m_ref: (R, D_pad) VMEM scratch in MXU dtype, reused across O tiles.
    o = pl.program_id(2)

    @pl.when(o == 0)
    def _():
        _, TT, D = src_ref.shape
        U = tgt_ref.shape[1]
        R = hptr_ref.shape[1]

        # Deep-biasing linear on the MXU (bf16 operands by default, f32 acc).
        hb = jnp.dot(hptr_ref[0].astype(wb_ref.dtype), wb_ref[...],
                     preferred_element_type=jnp.float32)            # (R, D)

        # Fused broadcast add: bb was folded into tgt in the wrapper, so this
        # is exactly joint = hptr@Wb + src[t] + (tgt[u] + bb).
        joint = (hb.reshape(TT, U, D)
                 + src_ref[0][:, None, :]
                 + tgt_ref[0][None, :, :])                          # (TT,U,D)

        if activation == "relu":
            act = jnp.maximum(joint, 0.0)
        else:  # 'tanh'
            act = jnp.tanh(joint)
        act = act.reshape(R, D)

        # Single MXU-dtype cast, reused for the store (when dtypes match) and
        # for the second matmul across all O tiles.
        act_m = act.astype(act_m_ref.dtype)
        act_m_ref[...] = act_m
        if act_ref.dtype == act_m_ref.dtype:
            act_ref[0] = act_m
        else:
            act_ref[0] = act.astype(act_ref.dtype)

    # Joiner linear on the MXU; the activation is reused across O tiles.
    out = jnp.dot(act_m_ref[...], w_ref[...],
                  preferred_element_type=jnp.float32) + b_ref[...]   # (R, TO)
    out_ref[0] = out.astype(out_ref.dtype)


# --------------------------------------------------------------------------
# Tiling helpers
# --------------------------------------------------------------------------
def _vmem_capacity_bytes():
    try:
        info = pltpu.get_tpu_info()
        cap = getattr(info, "vmem_capacity_bytes", None)
        if cap:
            return int(cap)
    except Exception:
        pass
    return 64 << 20  # conservative (v7x per-core VMEM)


def _choose_o_tile(O_pad, D_pad, mxu_isz, max_w_tile_bytes=4 << 20):
    """Largest O tile (multiple of 128, divides O_pad) with a bounded W tile."""
    max_to = max(128, (max_w_tile_bytes // (D_pad * mxu_isz)) // 128 * 128)
    cands = [t for t in range(128, O_pad + 1, 128) if O_pad % t == 0]
    fit = [t for t in cands if t <= max_to]
    return max(fit) if fit else min(cands)


def _tile_vmem_bytes(TT, U_pad, D_pad, A, TO, in_isz, mxu_isz, act_isz,
                     out_isz):
    """VMEM footprint of one row tile: double-buffered streams, resident
    weights, the MXU-dtype act scratch and ~3 live f32 temporaries."""
    lane = lambda n: _round_up(n, 128)
    sub = lambda n: _round_up(n, 8)
    R = sub(TT * U_pad)
    byt = 0
    byt += 2 * R * lane(A) * in_isz           # hptr tile
    byt += 2 * sub(TT) * D_pad * in_isz       # src tile
    byt += 2 * sub(U_pad) * D_pad * 4         # tgt(+bb) tile (f32)
    byt += 2 * sub(A) * D_pad * mxu_isz       # Wb (resident, 2 buffers)
    byt += 2 * D_pad * TO * mxu_isz           # W tile
    byt += 2 * 8 * TO * 4                     # b tile
    byt += 2 * R * TO * out_isz               # out tile
    byt += 2 * R * D_pad * act_isz            # act tile
    byt += R * D_pad * mxu_isz                # act_m scratch
    byt += 3 * R * D_pad * 4                  # hb / joint / act live f32 temps
    return byt


def _choose_t_tile(B, T, U_pad, D_pad, A, TO, in_isz, mxu_isz, act_isz,
                   out_isz, budget_bytes):
    """Pick TT (T rows per tile) and the padded T extent."""
    cost = lambda tt: _tile_vmem_bytes(tt, U_pad, D_pad, A, TO, in_isz,
                                       mxu_isz, act_isz, out_isz)
    # Exact divisors of T that keep the block legal ((8,128) rule).
    divs = [d for d in range(1, T + 1) if T % d == 0 and (d % 8 == 0 or d == T)]
    fitting = [d for d in divs if cost(d) <= budget_bytes]
    if fitting:
        tt = max(fitting)
        # Megacore (v7x): prefer >= 2 row tiles when B == 1 so both cores work.
        if B == 1 and T // tt < 2:
            smaller = [d for d in fitting if T // d >= 2]
            if smaller:
                tt = max(smaller)
        return tt, T, cost(tt)
    # No exact divisor fits the budget: pad T to a multiple-of-8 tile.
    tt = 8
    for cand in range(8, T + 1, 8):
        if cost(cand) <= budget_bytes:
            tt = cand
        else:
            break
    t_pad = _round_up(max(T, tt), tt)
    # TODO(synk): add U tiling if even TT=8 rows exceed the budget.
    return tt, t_pad, cost(tt)


# --------------------------------------------------------------------------
# Wrapper
# --------------------------------------------------------------------------
@functools.partial(jax.jit,
                   static_argnames=("activation", "mxu_dtype", "act_dtype"))
def joiner_biasing_forward(source_encodings, source_lengths,
                           target_encodings, target_lengths, hptr,
                           wb, bb, w, b, *,
                           activation="relu",
                           mxu_dtype=jnp.bfloat16,
                           act_dtype=None):
    if activation not in ("relu", "tanh"):
        raise ValueError(f"Unsupported activation {activation}")

    B, T, D = source_encodings.shape
    U = target_encodings.shape[1]
    A = hptr.shape[-1]
    O = w.shape[-1]
    out_dtype = source_encodings.dtype
    act_dtype = jnp.dtype(out_dtype) if act_dtype is None else jnp.dtype(act_dtype)
    mxu_dtype = jnp.dtype(mxu_dtype)

    # Lane/sublane-dense padding: unmasked vst stores for out/act and
    # guaranteed-free (R,D)<->(TT,U,D) reshapes inside the kernel.
    D_pad = _round_up(D, 128)
    O_pad = _round_up(O, 128)
    U_pad = _round_up(U, 8)

    in_isz = jnp.dtype(out_dtype).itemsize
    mxu_isz = mxu_dtype.itemsize
    act_isz = act_dtype.itemsize
    out_isz = in_isz

    # Generation-aware VMEM budget (128 MiB parts vs v7x's 64 MiB / core).
    vmem_cap = _vmem_capacity_bytes()
    if vmem_cap >= (100 << 20):
        budget, limit_cap = 56 << 20, 100 << 20
    else:
        budget, limit_cap = 20 << 20, 48 << 20

    TO = _choose_o_tile(O_pad, D_pad, mxu_isz)
    TT, T_pad, est_vmem = _choose_t_tile(B, T, U_pad, D_pad, A, TO, in_isz,
                                         mxu_isz, act_isz, out_isz, budget)
    R = TT * U_pad
    grid = (B, T_pad // TT, O_pad // TO)

    # Padded operands (pads are no-ops when dims are already aligned).
    src_p = jnp.pad(source_encodings, ((0, 0), (0, T_pad - T), (0, D_pad - D)))
    tgt_p = jnp.pad(target_encodings, ((0, 0), (0, U_pad - U), (0, D_pad - D)))
    bb_p = jnp.pad(bb.astype(jnp.float32).reshape(1, 1, D),
                   ((0, 0), (0, 0), (0, D_pad - D)))
    # Fold the biasing-linear bias into the (tiny) target encodings.
    tgt2 = tgt_p.astype(jnp.float32) + bb_p
    hptr_p = jnp.pad(hptr, ((0, 0), (0, T_pad - T), (0, U_pad - U), (0, 0)))
    hptr_flat = hptr_p.reshape(B, T_pad * U_pad, A)

    wb_c = jnp.pad(wb, ((0, 0), (0, D_pad - D))).astype(mxu_dtype)
    w_c = jnp.pad(w, ((0, D_pad - D), (0, O_pad - O))).astype(mxu_dtype)
    b2 = jnp.pad(b.reshape(1, O), ((0, 0), (0, O_pad - O))).astype(jnp.float32)

    vmem_limit = None
    if est_vmem > (16 << 20):
        vmem_limit = min(_round_up(est_vmem, 1 << 20) + (8 << 20), limit_cap)

    flops = (2 * B * T_pad * U_pad * A * D_pad
             + 2 * B * T_pad * U_pad * D_pad * O_pad
             + 3 * B * T_pad * U_pad * D_pad)
    transcendentals = B * T_pad * U_pad * D_pad if activation == "tanh" else 0
    bytes_accessed = (in_isz * (B * T_pad * D_pad + B * T_pad * U_pad * A)
                      + 4 * B * U_pad * D_pad
                      + act_isz * B * T_pad * U_pad * D_pad
                      + out_isz * B * T_pad * U_pad * O_pad
                      + mxu_isz * (A * D_pad + D_pad * O_pad)
                      + 4 * O_pad)

    out_flat, act_flat = pl.pallas_call(
        functools.partial(_joiner_kernel, activation=activation),
        out_shape=(
            jax.ShapeDtypeStruct((B, T_pad * U_pad, O_pad), out_dtype),
            jax.ShapeDtypeStruct((B, T_pad * U_pad, D_pad), act_dtype),
        ),
        grid_spec=pltpu.PrefetchScalarGridSpec(
            num_scalar_prefetch=0,
            grid=grid,
            in_specs=[
                pl.BlockSpec((1, TT, D_pad), lambda i, j, o: (i, j, 0)),    # src
                pl.BlockSpec((1, U_pad, D_pad), lambda i, j, o: (i, 0, 0)), # tgt+bb
                pl.BlockSpec((1, R, A), lambda i, j, o: (i, j, 0)),         # hptr
                pl.BlockSpec((A, D_pad), lambda i, j, o: (0, 0)),           # Wb
                pl.BlockSpec((D_pad, TO), lambda i, j, o: (0, o)),          # W tile
                pl.BlockSpec((1, TO), lambda i, j, o: (0, o)),              # b tile
            ],
            out_specs=[
                pl.BlockSpec((1, R, TO), lambda i, j, o: (i, j, o)),        # out
                pl.BlockSpec((1, R, D_pad), lambda i, j, o: (i, j, 0)),     # act
            ],
            scratch_shapes=[pltpu.VMEM((R, D_pad), mxu_dtype)],
        ),
        compiler_params=pltpu.CompilerParams(
            dimension_semantics=("parallel", "parallel", "arbitrary"),
            vmem_limit_bytes=vmem_limit),
        cost_estimate=pl.CostEstimate(
            flops=flops, transcendentals=transcendentals,
            bytes_accessed=bytes_accessed),
    )(src_p, tgt2, hptr_flat, wb_c, w_c, b2)

    out = out_flat.reshape(B, T_pad, U_pad, O_pad)[:, :T, :U, :O]
    act = act_flat.reshape(B, T_pad, U_pad, D_pad)[:, :T, :U, :D]
    # Lengths are passed through unchanged (as in the torch module).
    return out, source_lengths, target_lengths, act


# --------------------------------------------------------------------------
# Pure-JAX reference (same matmul operand precision) + self-test
# --------------------------------------------------------------------------
def _reference(src, tgt, hptr, wb, bb, w, b, mxu_dtype=jnp.float32):
    hb = jnp.einsum("btua,ad->btud", hptr.astype(mxu_dtype),
                    wb.astype(mxu_dtype),
                    preferred_element_type=jnp.float32) + bb
    joint = src[:, :, None, :] + tgt[:, None, :, :] + hb
    act = jnp.maximum(joint, 0.0)
    out = jnp.einsum("btud,do->btuo", act.astype(mxu_dtype),
                     w.astype(mxu_dtype),
                     preferred_element_type=jnp.float32) + b
    return out, act


if __name__ == "__main__":
    # Small shapes consistent with the module's forward.
    B, T, U, D, O, A = 2, 8, 8, 32, 16, 8

    key = jax.random.PRNGKey(0)
    k_src, k_tgt, k_hptr, k_wb, k_bb, k_w, k_b = jax.random.split(key, 7)

    src = jax.random.normal(k_src, (B, T, D), dtype=jnp.float32)
    tgt = jax.random.normal(k_tgt, (B, U, D), dtype=jnp.float32)
    hptr = jax.random.normal(k_hptr, (B, T, U, A), dtype=jnp.float32)
    src_lens = jnp.array([T, T - 2], dtype=jnp.int32)
    tgt_lens = jnp.array([U, U - 1], dtype=jnp.int32)

    # torch.nn.Linear-style init: U(-1/sqrt(fan_in), 1/sqrt(fan_in))
    bound_b = 1.0 / (A ** 0.5)
    wb = jax.random.uniform(k_wb, (A, D), jnp.float32, -bound_b, bound_b)
    bb = jax.random.uniform(k_bb, (D,), jnp.float32, -bound_b, bound_b)
    bound_l = 1.0 / (D ** 0.5)
    w = jax.random.uniform(k_w, (D, O), jnp.float32, -bound_l, bound_l)
    b = jax.random.uniform(k_b, (O,), jnp.float32, -bound_l, bound_l)

    # 1) f32 MXU path, f32 act: matches the torch module's f32 math.
    out32, osl, otl, act32 = joiner_biasing_forward(
        src, src_lens, tgt, tgt_lens, hptr, wb, bb, w, b,
        mxu_dtype=jnp.float32, act_dtype=jnp.float32)
    jax.block_until_ready((out32, osl, otl, act32))
    ref_out, ref_act = _reference(src, tgt, hptr, wb, bb, w, b, jnp.float32)
    assert out32.shape == (B, T, U, O)
    assert act32.shape == (B, T, U, D)
    assert jnp.allclose(out32, ref_out, atol=1e-5, rtol=1e-5)
    assert jnp.allclose(act32, ref_act, atol=1e-5, rtol=1e-5)
    assert jnp.array_equal(osl, src_lens)
    assert jnp.array_equal(otl, tgt_lens)

    # 2) bf16 MXU + bf16 act (perf default): f32 accumulation keeps numerics
    #    within joiner tolerance; act HBM write stream is halved.
    out16, _, _, act16 = joiner_biasing_forward(
        src, src_lens, tgt, tgt_lens, hptr, wb, bb, w, b,
        mxu_dtype=jnp.bfloat16, act_dtype=jnp.bfloat16)
    jax.block_until_ready((out16, act16))
    ref_out16, ref_act16 = _reference(src, tgt, hptr, wb, bb, w, b,
                                      jnp.bfloat16)
    assert act16.dtype == jnp.bfloat16
    assert jnp.allclose(act16.astype(jnp.float32), ref_act16,
                        atol=5e-2, rtol=5e-2)
    assert jnp.allclose(out16, ref_out16, atol=5e-2, rtol=5e-2)

    print("KERNEL_OK")
</pallas_src>

<mosaic_0001>
module attributes {stable_mosaic.version = 11 : i64} {
  func.func @_joiner_kernel(%arg0: i32, %arg1: i32, %arg2: i32, %arg3: memref<1x8x128xf32, #tpu.memory_space<vmem>>, %arg4: memref<1x8x128xf32, #tpu.memory_space<vmem>>, %arg5: memref<1x64x8xf32, #tpu.memory_space<vmem>>, %arg6: memref<8x128xf32, #tpu.memory_space<vmem>>, %arg7: memref<128x128xf32, #tpu.memory_space<vmem>>, %arg8: memref<1x128xf32, #tpu.memory_space<vmem>>, %arg9: memref<1x64x128xf32, #tpu.memory_space<vmem>>, %arg10: memref<1x64x128xf32, #tpu.memory_space<vmem>>, %arg11: memref<64x128xf32, #tpu.memory_space<vmem>>) attributes {dimension_semantics = [#tpu.dimension_semantics<parallel>, #tpu.dimension_semantics<parallel>, #tpu.dimension_semantics<arbitrary>], iteration_bounds = array<i64: 2, 1, 1>, scalar_prefetch = 0 : i64, scratch_operands = 1 : i64, tpu.core_type = #tpu.core_type<tc>, window_params = [{transform_indices = @transform_0, window_bounds = array<i64: 1, 8, 128>}, {transform_indices = @transform_1, window_bounds = array<i64: 1, 8, 128>}, {transform_indices = @transform_2, window_bounds = array<i64: 1, 64, 8>}, {pipeline_mode = #tpu.pipeline_mode<synchronous>, transform_indices = @transform_3, window_bounds = array<i64: 8, 128>}, {transform_indices = @transform_4, window_bounds = array<i64: 128, 128>}, {transform_indices = @transform_5, window_bounds = array<i64: 1, 128>}, {transform_indices = @transform_6, window_bounds = array<i64: 1, 64, 128>}, {transform_indices = @transform_7, window_bounds = array<i64: 1, 64, 128>}]} {
    %c0_i32 = arith.constant 0 : i32
    %0 = arith.cmpi eq, %arg2, %c0_i32 : i32
    %1 = arith.extui %0 : i1 to i32
    %c0_i32_0 = arith.constant 0 : i32
    %2 = arith.cmpi ne, %1, %c0_i32_0 : i32
    scf.if %2 {
      %c0_9 = arith.constant 0 : index
      %c0_10 = arith.constant 0 : index
      %c0_11 = arith.constant 0 : index
      %12 = vector.load %arg5[%c0_9, %c0_10, %c0_11] : memref<1x64x8xf32, #tpu.memory_space<vmem>>, vector<1x64x8xf32>
      %13 = vector.shape_cast %12 : vector<1x64x8xf32> to vector<64x8xf32>
      %c0_12 = arith.constant 0 : index
      %c0_13 = arith.constant 0 : index
      %14 = vector.load %arg6[%c0_12, %c0_13] : memref<8x128xf32, #tpu.memory_space<vmem>>, vector<8x128xf32>
      %cst_14 = arith.constant dense<0.000000e+00> : vector<64x128xf32>
      %15 = tpu.matmul %13, %14, %cst_14 {dimension_numbers = #tpu.dot_dimension_numbers<[1], [0], [0], [1], [0, 0, 1, 1], [], []>} : vector<64x8xf32>, vector<8x128xf32>, vector<64x128xf32> -> vector<64x128xf32>
      %16 = vector.shape_cast %15 : vector<64x128xf32> to vector<8x8x128xf32>
      %c0_15 = arith.constant 0 : index
      %c0_16 = arith.constant 0 : index
      %c0_17 = arith.constant 0 : index
      %17 = vector.load %arg3[%c0_15, %c0_16, %c0_17] : memref<1x8x128xf32, #tpu.memory_space<vmem>>, vector<1x8x128xf32>
      %18 = vector.shape_cast %17 : vector<1x8x128xf32> to vector<8x128xf32>
      %19 = vector.shape_cast %18 : vector<8x128xf32> to vector<8x1x128xf32>
      %20 = vector.broadcast %19 : vector<8x1x128xf32> to vector<8x8x128xf32>
      %21 = arith.addf %16, %20 : vector<8x8x128xf32>
      %c0_18 = arith.constant 0 : index
      %c0_19 = arith.constant 0 : index
      %c0_20 = arith.constant 0 : index
      %22 = vector.load %arg4[%c0_18, %c0_19, %c0_20] : memref<1x8x128xf32, #tpu.memory_space<vmem>>, vector<1x8x128xf32>
      %23 = vector.shape_cast %22 : vector<1x8x128xf32> to vector<8x128xf32>
      %24 = vector.shape_cast %23 : vector<8x128xf32> to vector<1x8x128xf32>
      %25 = vector.broadcast %24 : vector<1x8x128xf32> to vector<8x8x128xf32>
      %26 = arith.addf %21, %25 : vector<8x8x128xf32>
      %cst_21 = arith.constant 0.000000e+00 : f32
      %27 = vector.broadcast %cst_21 : f32 to vector<8x8x128xf32>
      %28 = arith.maximumf %26, %27 : vector<8x8x128xf32>
      %29 = vector.shape_cast %28 : vector<8x8x128xf32> to vector<64x128xf32>
      %c0_22 = arith.constant 0 : index
      %c0_23 = arith.constant 0 : index
      %30 = vector.load %arg11[%c0_22, %c0_23] : memref<64x128xf32, #tpu.memory_space<vmem>>, vector<64x128xf32>
      tpu.vector_store %arg11[%c0_22, %c0_23], %29 {strides = array<i32>} : memref<64x128xf32, #tpu.memory_space<vmem>>, vector<64x128xf32>,
      %c0_24 = arith.constant 0 : index
      %c0_25 = arith.constant 0 : index
      %c0_26 = arith.constant 0 : index
      %31 = vector.load %arg10[%c0_24, %c0_25, %c0_26] : memref<1x64x128xf32, #tpu.memory_space<vmem>>, vector<1x64x128xf32>
      %32 = vector.shape_cast %31 : vector<1x64x128xf32> to vector<64x128xf32>
      %33 = vector.shape_cast %29 : vector<64x128xf32> to vector<1x64x128xf32>
      tpu.vector_store %arg10[%c0_24, %c0_25, %c0_26], %33 {strides = array<i32>} : memref<1x64x128xf32, #tpu.memory_space<vmem>>, vector<1x64x128xf32>,
    } else {
    }
    %c0 = arith.constant 0 : index
    %c0_1 = arith.constant 0 : index
    %3 = vector.load %arg11[%c0, %c0_1] : memref<64x128xf32, #tpu.memory_space<vmem>>, vector<64x128xf32>
    %c0_2 = arith.constant 0 : index
    %c0_3 = arith.constant 0 : index
    %4 = vector.load %arg7[%c0_2, %c0_3] : memref<128x128xf32, #tpu.memory_space<vmem>>, vector<128x128xf32>
    %cst = arith.constant dense<0.000000e+00> : vector<64x128xf32>
    %5 = tpu.matmul %3, %4, %cst {dimension_numbers = #tpu.dot_dimension_numbers<[1], [0], [0], [1], [0, 0, 1, 1], [], []>} : vector<64x128xf32>, vector<128x128xf32>, vector<64x128xf32> -> vector<64x128xf32>
    %c0_4 = arith.constant 0 : index
    %c0_5 = arith.constant 0 : index
    %6 = vector.load %arg8[%c0_4, %c0_5] : memref<1x128xf32, #tpu.memory_space<vmem>>, vector<1x128xf32>
    %7 = vector.broadcast %6 : vector<1x128xf32> to vector<64x128xf32>
    %8 = arith.addf %5, %7 : vector<64x128xf32>
    %c0_6 = arith.constant 0 : index
    %c0_7 = arith.constant 0 : index
    %c0_8 = arith.constant 0 : index
    %9 = vector.load %arg9[%c0_6, %c0_7, %c0_8] : memref<1x64x128xf32, #tpu.memory_space<vmem>>, vector<1x64x128xf32>
    %10 = vector.shape_cast %9 : vector<1x64x128xf32> to vector<64x128xf32>
    %11 = vector.shape_cast %8 : vector<64x128xf32> to vector<1x64x128xf32>
    tpu.vector_store %arg9[%c0_6, %c0_7, %c0_8], %11 {strides = array<i32>} : memref<1x64x128xf32, #tpu.memory_space<vmem>>, vector<1x64x128xf32>,
    return
  }
  func.func @transform_0(%arg0: i32, %arg1: i32, %arg2: i32) -> (i32, i32, i32) {
    %c0_i32 = arith.constant 0 : i32
    %c0_i32_0 = arith.constant 0 : i32
    return %arg0, %arg1, %c0_i32 : i32, i32, i32
  }
  func.func @transform_1(%arg0: i32, %arg1: i32, %arg2: i32) -> (i32, i32, i32) {
    %c0_i32 = arith.constant 0 : i32
    %c0_i32_0 = arith.constant 0 : i32
    %c0_i32_1 = arith.constant 0 : i32
    return %arg0, %c0_i32, %c0_i32_0 : i32, i32, i32
  }
  func.func @transform_2(%arg0: i32, %arg1: i32, %arg2: i32) -> (i32, i32, i32) {
    %c0_i32 = arith.constant 0 : i32
    %c0_i32_0 = arith.constant 0 : i32
    return %arg0, %arg1, %c0_i32 : i32, i32, i32
  }
  func.func @transform_3(%arg0: i32, %arg1: i32, %arg2: i32) -> (i32, i32) {
    %c0_i32 = arith.constant 0 : i32
    %c0_i32_0 = arith.constant 0 : i32
    %c0_i32_1 = arith.constant 0 : i32
    return %c0_i32, %c0_i32_0 : i32, i32
  }
  func.func @transform_4(%arg0: i32, %arg1: i32, %arg2: i32) -> (i32, i32) {
    %c0_i32 = arith.constant 0 : i32
    %c0_i32_0 = arith.constant 0 : i32
    return %c0_i32, %arg2 : i32, i32
  }
  func.func @transform_5(%arg0: i32, %arg1: i32, %arg2: i32) -> (i32, i32) {
    %c0_i32 = arith.constant 0 : i32
    %c0_i32_0 = arith.constant 0 : i32
    return %c0_i32, %arg2 : i32, i32
  }
  func.func @transform_6(%arg0: i32, %arg1: i32, %arg2: i32) -> (i32, i32, i32) {
    %c0_i32 = arith.constant 0 : i32
    return %arg0, %arg1, %arg2 : i32, i32, i32
  }
  func.func @transform_7(%arg0: i32, %arg1: i32, %arg2: i32) -> (i32, i32, i32) {
    %c0_i32 = arith.constant 0 : i32
    %c0_i32_0 = arith.constant 0 : i32
    return %arg0, %arg1, %c0_i32 : i32, i32, i32
  }
}

</mosaic_0001>

<llo_original>
// kernel: joiner_biasing_forward.1
$region0: #{joiner_biasing_forward.1}
  #allocation0 [shape = 'u32[]', space=smem, size = 0x4, offset = 0x4, fixed_abs, tag = 'smem constant byte address 0x4 - core index']
  #allocation1 [shape = 'u32[144,128]{1,0:T(1,128)}', space=vmem, size = 0x12000, scoped, tag = 'internal scratch']
  #allocation2 [shape = 'f32[64,128]{1,0:T(8,128)}', space=vmem, size = 0x8000, scoped, tag = 'scratch operand']
  %s0 = inlined_call_operand.vmem [shape: f32[2,8,128], index: 0, kind: input, shape index: {}]
  %s1 = inlined_call_operand.vmem [shape: f32[2,8,128], index: 1, kind: input, shape index: {}]
  %s2 = inlined_call_operand.vmem [shape: f32[2,64,8], index: 2, kind: input, shape index: {}]
  %s3 = inlined_call_operand.vmem [shape: f32[8,128], index: 3, kind: input, shape index: {}]
  %s4 = inlined_call_operand.vmem [shape: f32[128,128], index: 4, kind: input, shape index: {}]
  %s5 = inlined_call_operand.vmem [shape: f32[1,128], index: 5, kind: input, shape index: {}]
  %s6 = inlined_call_operand.hbm [shape: f32[2,64,128], index: 6, kind: output, shape index: {0}]
  %s7 = inlined_call_operand.hbm [shape: f32[2,64,128], index: 7, kind: output, shape index: {1}]
  %8 = xla_tuple %s6, %s7
  %s9 = sld [smem:[#allocation0]]
  $region69: #{joiner_biasing_forward.1} parent=0
    _
  %s11 = ssub.s32 1, %s9
  %s12 = scalar_select 0, %s11, %s9
  $region1: #{joiner_biasing_forward.1} parent=0
    #allocation3 [shape = 'u8[65536]{0}', space=vmem, size = 0x10000, scoped, tag = 'output window, operand 0']
    #allocation4 [shape = 's32[2]{0}', space=sflag, size = 0x8, scoped, tag = 'scoped memory for joiner_biasing_forward.1']
    #allocation5 [shape = 'u8[65536]{0}', space=vmem, size = 0x10000, scoped, tag = 'output window, operand 1']
    #allocation6 [shape = 's32[2]{0}', space=sflag, size = 0x8, scoped, tag = 'scoped memory for joiner_biasing_forward.1']
    %13 = vsyncpa [#allocation4], 0
    %s14 = scalar_lea.sflag [#allocation4], 1
    %15 = vsyncpa %s14, 0
    %16 = vsyncpa [#allocation6], 0
    %s17 = scalar_lea.sflag [#allocation6], 1
    %18 = vsyncpa %s17, 0
    loop: start=0, step=1, limit=4
    $region2: #{joiner_biasing_forward.1} parent=1 // loop_pre_header
      _
    $region3: #{joiner_biasing_forward.1} parent=1 // loop_header
      %s20 = sphi 0, %s24
      %p21 = scmp.ge.s32.totalorder %s20, 4
      %s27 = sphi 0, %s46
      %s28 = sphi 0, %s42
      %s29 = sphi 0, %s38
      %s30 = sphi 0, %s27
      %s31 = sphi 0, %s28
      %s32 = sphi 0, %s29
      %s33 = sphi 0, %s30
      %s34 = sphi 0, %s31
      %s35 = sphi 0, %s32
      %s51 = sphi 0, %s53
      %s54 = sphi 0, %s51
      %s55 = sphi 0, %s54
      %s71 = sphi 0, %s55
      %s77 = sphi 0, %s79
      %s80 = sphi 0, %s77
      %s81 = sphi 0, %s80
      %s97 = sphi 0, %s81
      %s105 = sphi 0, %s107
      %s108 = sphi 0, %s105
      %s109 = sphi 0, %s108
      %s125 = sphi 0, %s109
      %s129 = sphi 0, %s129
      %s131 = sphi 0, %s129
      %s132 = sphi 0, %s131
      %s146 = sphi 0, %s132
      %s152 = sphi 0, %s154
      %s155 = sphi 0, %s152
      %s156 = sphi 0, %s155
      %s172 = sphi 0, %s156
      %s178 = sphi 0, %s180
      %s181 = sphi 0, %s178
      %s182 = sphi 0, %s181
      %s198 = sphi 0, %s182
      %s208 = sphi 0, %s210
      %s211 = sphi 0, %s208
      %s212 = sphi 0, %s211
      %s228 = sphi 0, %s212
      %s236 = sphi 0, %s238
      %s239 = sphi 0, %s236
      %s240 = sphi 0, %s239
      %s256 = sphi 0, %s240
    $region4: #{joiner_biasing_forward.1} parent=1 // loop_header_branch
      %23 = sbr.rel (%p21) target = $region8
    $region5: #{joiner_biasing_forward.1} parent=1 // loop_body
      %s25 = ssub.s32 %s20, 1
      %s26 = ssub.s32 %s20, 2
      %s36 = sadd.s32 1, %s29
      %p37 = scmp.ge.s32.totalorder %s36, 1
      %s38 = scalar_select %p37, 0, %s36
      %s39 = sadd.s32 1, %s28
      %s40 = scalar_select %p37, %s39, %s28
      %p41 = scmp.ge.s32.totalorder %s40, 1
      %s42 = scalar_select %p41, 0, %s40
      %s43 = sadd.s32 1, %s27
      %s44 = scalar_select %p41, %s43, %s27
      %p45 = scmp.ge.s32.totalorder %s44, 2
      %s46 = scalar_select %p45, 0, %s44
      %s47 = ssub.s32 %s27, %s46
      %s48 = ssub.s32 %s28, %s42
      %s49 = sor.u32 %s47, %s48
      %p50 = scmp.eq.s32.totalorder %s49, 0
      %s52 = sadd.s32 %s51, 1
      %s53 = scalar_select %p50, %s51, %s52
      %p56 = pneg %p50
      %p57 = scmp.eq.s32.totalorder %s20, 1
      %p58 = por %p56, %p57
      %p59 = scmp.ne.s32.totalorder %s51, %s54
      %p60 = scmp.eq.s32.totalorder %s20, 0
      %p61 = por %p59, %p60
      %p62 = scmp.ne.s32.totalorder %s51, %s54
      %p63 = scmp.eq.s32.totalorder %s25, 1
      %p64 = por %p62, %p63
      %p65 = scmp.ne.s32.totalorder %s54, %s55
      %p66 = scmp.eq.s32.totalorder %s25, 0
      %p67 = por %p65, %p66
      %p68 = scmp.ne.s32.totalorder %s54, %s55
      %p69 = scmp.eq.s32.totalorder %s26, 1
      %p70 = por %p68, %p69
      %p72 = scmp.ne.s32.totalorder %s55, %s71
      %p73 = scmp.eq.s32.totalorder %s26, 0
      %p74 = por %p72, %p73
      %s75 = ssub.s32 %s27, %s46
      %p76 = scmp.eq.s32.totalorder %s75, 0
      %s78 = sadd.s32 %s77, 1
      %s79 = scalar_select %p76, %s77, %s78
      %p82 = pneg %p76
      %p83 = scmp.eq.s32.totalorder %s20, 1
      %p84 = por %p82, %p83
      %p85 = scmp.ne.s32.totalorder %s77, %s80
      %p86 = scmp.eq.s32.totalorder %s20, 0
      %p87 = por %p85, %p86
      %p88 = scmp.ne.s32.totalorder %s77, %s80
      %p89 = scmp.eq.s32.totalorder %s25, 1
      %p90 = por %p88, %p89
      %p91 = scmp.ne.s32.totalorder %s80, %s81
      %p92 = scmp.eq.s32.totalorder %s25, 0
      %p93 = por %p91, %p92
      %p94 = scmp.ne.s32.totalorder %s80, %s81
      %p95 = scmp.eq.s32.totalorder %s26, 1
      %p96 = por %p94, %p95
      %p98 = scmp.ne.s32.totalorder %s81, %s97
      %p99 = scmp.eq.s32.totalorder %s26, 0
      %p100 = por %p98, %p99
      %s101 = ssub.s32 %s27, %s46
      %s102 = ssub.s32 %s28, %s42
      %s103 = sor.u32 %s101, %s102
      %p104 = scmp.eq.s32.totalorder %s103, 0
      %s106 = sadd.s32 %s105, 1
      %s107 = scalar_select %p104, %s105, %s106
      %p110 = pneg %p104
      %p111 = scmp.eq.s32.totalorder %s20, 1
      %p112 = por %p110, %p111
      %p113 = scmp.ne.s32.totalorder %s105, %s108
      %p114 = scmp.eq.s32.totalorder %s20, 0
      %p115 = por %p113, %p114
      %p116 = scmp.ne.s32.totalorder %s105, %s108
      %p117 = scmp.eq.s32.totalorder %s25, 1
      %p118 = por %p116, %p117
      %p119 = scmp.ne.s32.totalorder %s108, %s109
      %p120 = scmp.eq.s32.totalorder %s25, 0
      %p121 = por %p119, %p120
      %p122 = scmp.ne.s32.totalorder %s108, %s109
      %p123 = scmp.eq.s32.totalorder %s26, 1
      %p124 = por %p122, %p123
      %p126 = scmp.ne.s32.totalorder %s109, %s125
      %p127 = scmp.eq.s32.totalorder %s26, 0
      %p128 = por %p126, %p127
      %s130 = sadd.s32 %s129, 1
      %p133 = scmp.eq.s32.totalorder %s20, 1
      %p134 = scmp.ne.s32.totalorder %s129, %s131
      %p135 = scmp.eq.s32.totalorder %s20, 0
      %p136 = por %p134, %p135
      %p137 = scmp.ne.s32.totalorder %s129, %s131
      %p138 = scmp.eq.s32.totalorder %s25, 1
      %p139 = por %p137, %p138
      %p140 = scmp.ne.s32.totalorder %s131, %s132
      %p141 = scmp.eq.s32.totalorder %s25, 0
      %p142 = por %p140, %p141
      %p143 = scmp.ne.s32.totalorder %s131, %s132
      %p144 = scmp.eq.s32.totalorder %s26, 1
      %p145 = por %p143, %p144
      %p147 = scmp.ne.s32.totalorder %s132, %s146
      %p148 = scmp.eq.s32.totalorder %s26, 0
      %p149 = por %p147, %p148
      %s150 = ssub.s32 %s29, %s38
      %p151 = scmp.eq.s32.totalorder %s150, 0
      %s153 = sadd.s32 %s152, 1
      %s154 = scalar_select %p151, %s152, %s153
      %p157 = pneg %p151
      %p158 = scmp.eq.s32.totalorder %s20, 1
      %p159 = por %p157, %p158
      %p160 = scmp.ne.s32.totalorder %s152, %s155
      %p161 = scmp.eq.s32.totalorder %s20, 0
      %p162 = por %p160, %p161
      %p163 = scmp.ne.s32.totalorder %s152, %s155
      %p164 = scmp.eq.s32.totalorder %s25, 1
      %p165 = por %p163, %p164
      %p166 = scmp.ne.s32.totalorder %s155, %s156
      %p167 = scmp.eq.s32.totalorder %s25, 0
      %p168 = por %p166, %p167
      %p169 = scmp.ne.s32.totalorder %s155, %s156
      %p170 = scmp.eq.s32.totalorder %s26, 1
      %p171 = por %p169, %p170
      %p173 = scmp.ne.s32.totalorder %s156, %s172
      %p174 = scmp.eq.s32.totalorder %s26, 0
      %p175 = por %p173, %p174
      %s176 = ssub.s32 %s29, %s38
      %p177 = scmp.eq.s32.totalorder %s176, 0
      %s179 = sadd.s32 %s178, 1
      %s180 = scalar_select %p177, %s178, %s179
      %p183 = pneg %p177
      %p184 = scmp.eq.s32.totalorder %s20, 1
      %p185 = por %p183, %p184
      %p186 = scmp.ne.s32.totalorder %s178, %s181
      %p187 = scmp.eq.s32.totalorder %s20, 0
      %p188 = por %p186, %p187
      %p189 = scmp.ne.s32.totalorder %s178, %s181
      %p190 = scmp.eq.s32.totalorder %s25, 1
      %p191 = por %p189, %p190
      %p192 = scmp.ne.s32.totalorder %s181, %s182
      %p193 = scmp.eq.s32.totalorder %s25, 0
      %p194 = por %p192, %p193
      %p195 = scmp.ne.s32.totalorder %s181, %s182
      %p196 = scmp.eq.s32.totalorder %s26, 1
      %p197 = por %p195, %p196
      %p199 = scmp.ne.s32.totalorder %s182, %s198
      %p200 = scmp.eq.s32.totalorder %s26, 0
      %p201 = por %p199, %p200
      %s202 = ssub.s32 %s27, %s46
      %s203 = ssub.s32 %s28, %s42
      %s204 = sor.u32 %s202, %s203
      %s205 = ssub.s32 %s29, %s38
      %s206 = sor.u32 %s204, %s205
      %p207 = scmp.eq.s32.totalorder %s206, 0
      %s209 = sadd.s32 %s208, 1
      %s210 = scalar_select %p207, %s208, %s209
      %p213 = pneg %p207
      %p214 = scmp.eq.s32.totalorder %s20, 1
      %p215 = por %p213, %p214
      %p216 = scmp.ne.s32.totalorder %s208, %s211
      %p217 = scmp.eq.s32.totalorder %s20, 0
      %p218 = por %p216, %p217
      %p219 = scmp.ne.s32.totalorder %s208, %s211
      %p220 = scmp.eq.s32.totalorder %s25, 1
      %p221 = por %p219, %p220
      %p222 = scmp.ne.s32.totalorder %s211, %s212
      %p223 = scmp.eq.s32.totalorder %s25, 0
      %p224 = por %p222, %p223
      %p225 = scmp.ne.s32.totalorder %s211, %s212
      %p226 = scmp.eq.s32.totalorder %s26, 1
      %p227 = por %p225, %p226
      %p229 = scmp.ne.s32.totalorder %s212, %s228
      %p230 = scmp.eq.s32.totalorder %s26, 0
      %p231 = por %p229, %p230
      %s232 = ssub.s32 %s27, %s46
      %s233 = ssub.s32 %s28, %s42
      %s234 = sor.u32 %s232, %s233
      %p235 = scmp.eq.s32.totalorder %s234, 0
      %s237 = sadd.s32 %s236, 1
      %s238 = scalar_select %p235, %s236, %s237
      %p241 = pneg %p235
      %p242 = scmp.eq.s32.totalorder %s20, 1
      %p243 = por %p241, %p242
      %p244 = scmp.ne.s32.totalorder %s236, %s239
      %p245 = scmp.eq.s32.totalorder %s20, 0
      %p246 = por %p244, %p245
      %p247 = scmp.ne.s32.totalorder %s236, %s239
      %p248 = scmp.eq.s32.totalorder %s25, 1
      %p249 = por %p247, %p248
      %p250 = scmp.ne.s32.totalorder %s239, %s240
      %p251 = scmp.eq.s32.totalorder %s25, 0
      %p252 = por %p250, %p251
      %p253 = scmp.ne.s32.totalorder %s239, %s240
      %p254 = scmp.eq.s32.totalorder %s26, 1
      %p255 = por %p253, %p254
      %p257 = scmp.ne.s32.totalorder %s240, %s256
      %p258 = scmp.eq.s32.totalorder %s26, 0
      %p259 = por %p257, %p258
      %p260 = scmp.le.s32.totalorder 1, %s20
      %p261 = scmp.lt.s32.totalorder %s20, 3
      %p262 = pnand %p260, %p261
      %p263 = pneg %p262
      // Predicated region
      $region9: #{joiner_biasing_forward.1} parent=5 // pred_check
        _
      $region10: #{joiner_biasing_forward.1} parent=5 // pred_check_branch
        %265 = sbr.rel (%p262) target = $region12
      $region11: #{joiner_biasing_forward.1} parent=5 // pred_region
        %s266 = ssub.s32 %s20, 1
        // Predicated region
        $region13: #{joiner_biasing_forward.1} parent=11 // pred_check
          %p267 = pneg %p142
        $region14: #{joiner_biasing_forward.1} parent=11 // pred_check_branch
          %269 = sbr.rel (%p267) target = $region16
        $region15: #{joiner_biasing_forward.1} parent=11 // pred_region
          _
        $region16: #{joiner_biasing_forward.1} parent=11 // pred_fallthru
          _
        // Predicated region
        $region17: #{joiner_biasing_forward.1} parent=11 // pred_check
          %p270 = pneg %p168
        $region18: #{joiner_biasing_forward.1} parent=11 // pred_check_branch
          %272 = sbr.rel (%p270) target = $region20
        $region19: #{joiner_biasing_forward.1} parent=11 // pred_region
          %p273 = scmp.lt.s32.totalorder %s32, 0
          %s274 = scalar_select %p273, %s32, 0
          %s275 = smul.addr %s274, 8
          %s276 = scalar_lea.vmem %s4, %s275
        $region20: #{joiner_biasing_forward.1} parent=11 // pred_fallthru
          _
        // Predicated region
        $region21: #{joiner_biasing_forward.1} parent=11 // pred_check
          %p277 = pneg %p194
        $region22: #{joiner_biasing_forward.1} parent=11 // pred_check_branch
          %279 = sbr.rel (%p277) target = $region24
        $region23: #{joiner_biasing_forward.1} parent=11 // pred_region
          %p280 = scmp.lt.s32.totalorder %s32, 0
          %s281 = scalar_select %p280, %s32, 0
          %s282 = scalar_lea.vmem %s5, %s281
        $region24: #{joiner_biasing_forward.1} parent=11 // pred_fallthru
          _
      $region12: #{joiner_biasing_forward.1} parent=5 // pred_fallthru
        _
      %p283 = scmp.lt.s32.totalorder %s20, 2
      // Predicated region
      $region25: #{joiner_biasing_forward.1} parent=5 // pred_check
        %p284 = pneg %p283
      $region26: #{joiner_biasing_forward.1} parent=5 // pred_check_branch
        %286 = sbr.rel (%p284) target = $region28
      $region27: #{joiner_biasing_forward.1} parent=5 // pred_region
        // Predicated region
        $region29: #{joiner_biasing_forward.1} parent=27 // pred_check
          %p287 = pneg %p61
        $region30: #{joiner_biasing_forward.1} parent=27 // pred_check_branch
          %289 = sbr.rel (%p287) target = $region32
        $region31: #{joiner_biasing_forward.1} parent=27 // pred_region
          %p290 = scmp.lt.s32.totalorder %s27, 1
          %s291 = scalar_select %p290, %s27, 1
          %p292 = scmp.lt.s32.totalorder %s28, 0
          %s293 = scalar_select %p292, %s28, 0
          %s294 = sadd.s32 %s293, %s291
          %s295 = smul.addr %s294, 8
          %s296 = scalar_lea.vmem %s0, %s295
        $region32: #{joiner_biasing_forward.1} parent=27 // pred_fallthru
          _
        // Predicated region
        $region33: #{joiner_biasing_forward.1} parent=27 // pred_check
          %p297 = pneg %p87
        $region34: #{joiner_biasing_forward.1} parent=27 // pred_check_branch
          %299 = sbr.rel (%p297) target = $region36
        $region35: #{joiner_biasing_forward.1} parent=27 // pred_region
          %p300 = scmp.lt.s32.totalorder %s27, 1
          %s301 = scalar_select %p300, %s27, 1
          %s302 = smul.addr %s301, 8
          %s303 = scalar_lea.vmem %s1, %s302
        $region36: #{joiner_biasing_forward.1} parent=27 // pred_fallthru
          _
        // Predicated region
        $region37: #{joiner_biasing_forward.1} parent=27 // pred_check
          %p304 = pneg %p115
        $region38: #{joiner_biasing_forward.1} parent=27 // pred_check_branch
          %306 = sbr.rel (%p304) target = $region40
        $region39: #{joiner_biasing_forward.1} parent=27 // pred_region
          %s307 = smul.u32 8, %s28
          %p308 = scmp.lt.s32.totalorder %s27, 1
          %s309 = scalar_select %p308, %s27, 1
          %p310 = scmp.lt.s32.totalorder %s307, 7
          %s311 = scalar_select %p310, %s307, 7
          %s312 = smul.addr %s309, 8
          %s313 = sadd.s32 %s311, %s312
          %s314 = smul.addr %s313, 8
          %s315 = scalar_lea.vmem %s2, %s314
          %s316 = smul.u32 8, %s28
        $region40: #{joiner_biasing_forward.1} parent=27 // pred_fallthru
          _
      $region28: #{joiner_biasing_forward.1} parent=5 // pred_fallthru
        _
      %p317 = scmp.le.s32.totalorder 1, %s20
      %p318 = scmp.lt.s32.totalorder %s20, 3
      %p319 = pnand %p317, %p318
      %p320 = pneg %p319
      // Predicated region
      $region41: #{joiner_biasing_forward.1} parent=5 // pred_check
        _
      $region42: #{joiner_biasing_forward.1} parent=5 // pred_check_branch
        %322 = sbr.rel (%p319) target = $region44
      $region43: #{joiner_biasing_forward.1} parent=5 // pred_region
        %s323 = ssub.s32 %s20, 1
        %p324 = scmp.lt.s32.totalorder %s30, 1
        %s325 = scalar_select %p324, %s30, 1
        %p326 = scmp.lt.s32.totalorder %s31, 0
        %s327 = scalar_select %p326, %s31, 0
        %s328 = sadd.s32 %s327, %s325
        %s329 = smul.addr %s328, 8
        %s330 = scalar_lea.vmem %s0, %s329
        %p331 = pneg %p67
        %p332 = pneg %p64
        %p333 = scmp.lt.s32.totalorder %s30, 1
        %s334 = scalar_select %p333, %s30, 1
        %s335 = smul.addr %s334, 8
        %s336 = scalar_lea.vmem %s1, %s335
        %p337 = pneg %p93
        %p338 = pneg %p90
        %s339 = smul.u32 8, %s31
        %p340 = scmp.lt.s32.totalorder %s30, 1
        %s341 = scalar_select %p340, %s30, 1
        %p342 = scmp.lt.s32.totalorder %s339, 7
        %s343 = scalar_select %p342, %s339, 7
        %s344 = smul.addr %s341, 8
        %s345 = sadd.s32 %s343, %s344
        %s346 = smul.addr %s345, 8
        %s347 = scalar_lea.vmem %s2, %s346
        %p348 = pneg %p121
        %p349 = pneg %p118
        %p350 = pneg %p142
        %p351 = pneg %p139
        %p352 = scmp.lt.s32.totalorder %s32, 0
        %s353 = scalar_select %p352, %s32, 0
        %s354 = smul.addr %s353, 8
        %s355 = scalar_lea.vmem %s4, %s354
        %p356 = pneg %p168
        %p357 = pneg %p165
        %p358 = scmp.lt.s32.totalorder %s32, 0
        %s359 = scalar_select %p358, %s32, 0
        %s360 = scalar_lea.vmem %s5, %s359
        %p361 = pneg %p194
        %p362 = pneg %p191
        %p363 = pneg %p224
        %p364 = pneg %p221
        %s365 = sand.u32 %s211, 1
        %s366 = scalar_lea.sflag [#allocation4], %s365
        %s367 = sand.u32 %s211, 1
        %s368 = smul.addr %s367, 64
        %s369 = scalar_lea.vmem [#allocation3], %s368
        %p370 = pneg %p252
        %p371 = pneg %p249
        %s372 = sand.u32 %s239, 1
        %s373 = scalar_lea.sflag [#allocation6], %s372
        %s374 = sand.u32 %s239, 1
        %s375 = smul.addr %s374, 64
        %s376 = scalar_lea.vmem [#allocation5], %s375
        %p377 = scmp.lt.s32.totalorder %s30, 1
        %s378 = scalar_select %p377, %s30, 1
        %p379 = scmp.lt.s32.totalorder %s31, 0
        %s380 = scalar_select %p379, %s31, 0
        %s381 = sadd.s32 %s380, %s378
        %s382 = smul.addr %s381, 8
        %s383 = scalar_lea.vmem %s0, %s382
        %p384 = scmp.lt.s32.totalorder %s30, 1
        %s385 = scalar_select %p384, %s30, 1
        %s386 = smul.addr %s385, 8
        %s387 = scalar_lea.vmem %s1, %s386
        %s388 = smul.u32 8, %s31
        %p389 = scmp.lt.s32.totalorder %s30, 1
        %s390 = scalar_select %p389, %s30, 1
        %p391 = scmp.lt.s32.totalorder %s388, 7
        %s392 = scalar_select %p391, %s388, 7
        %s393 = smul.addr %s390, 8
        %s394 = sadd.s32 %s392, %s393
        %s395 = smul.addr %s394, 8
        %s396 = scalar_lea.vmem %s2, %s395
        %s397 = smul.u32 8, %s31
        %p398 = scmp.lt.s32.totalorder %s32, 0
        %s399 = scalar_select %p398, %s32, 0
        %s400 = smul.addr %s399, 8
        %s401 = scalar_lea.vmem %s4, %s400
        %p402 = scmp.lt.s32.totalorder %s32, 0
        %s403 = scalar_select %p402, %s32, 0
        %s404 = scalar_lea.vmem %s5, %s403
        %s405 = smul.u32 8, %s31
        %s406 = smul.u32 8, %s31
        %p407 = scmp.eq.s32.totalorder %s32, 0
        // Predicated region
        $region45: #{joiner_biasing_forward.1} parent=43 // pred_check
          %p408 = pneg %p407
        $region46: #{joiner_biasing_forward.1} parent=43 // pred_check_branch
          %410 = sbr.rel (%p408) target = $region48
        $region47: #{joiner_biasing_forward.1} parent=43 // pred_region
          %v411 = vld [vmem:[%s396] sm:$0xff]
          %v412 = vld [vmem:[%s396 + $0x8] sm:$0xff]
          %v413 = vld [vmem:[%s396 + $0x10] sm:$0xff]
          %v414 = vld [vmem:[%s396 + $0x18] sm:$0xff]
          %v415 = vld [vmem:[%s396 + $0x20] sm:$0xff]
          %v416 = vld [vmem:[%s396 + $0x28] sm:$0xff]
          %v417 = vld [vmem:[%s396 + $0x30] sm:$0xff]
          %v418 = vld [vmem:[%s396 + $0x38] sm:$0xff]
          %v419 = vld [vmem:[%s3] sm:$0xff]
          %vm420 = vcmask 64512
          %v422 = vsel %vm420, %v411, 0
          %v425 = vsel %vm420, %v412, 0
          %v428 = vsel %vm420, %v413, 0
          %v431 = vsel %vm420, %v414, 0
          %v434 = vsel %vm420, %v415, 0
          %v437 = vsel %vm420, %v416, 0
          %v440 = vsel %vm420, %v417, 0
          %v443 = vsel %vm420, %v418, 0
          %445 = vmatprep.subr.mxu0 0.0
          %446 = vmatpush1.msra.mxu0 %v419
          %447 = vmatprep.subr.mxu0 0.0
          %448 = vmatpush1.msra.mxu0 0.0
          %449 = vmatprep.subr.mxu0 0.0
          %450 = vmatpush1.msra.mxu0 0.0
          %451 = vmatprep.subr.mxu0 0.0
          %452 = vmatpush1.msra.mxu0 0.0
          %453 = vmatprep.subr.mxu0 0.0
          %454 = vmatpush1.msra.mxu0 0.0
          %455 = vmatprep.subr.mxu0 0.0
          %456 = vmatpush1.msra.mxu0 0.0
          %457 = vmatprep.subr.mxu0 0.0
          %458 = vmatpush1.msra.mxu0 0.0
          %459 = vmatprep.subr.mxu0 0.0
          %460 = vmatpush1.msra.mxu0 0.0
          %461 = vmatprep.subr.mxu0 0.0
          %462 = vmatpush1.msra.mxu0 0.0
          %463 = vmatprep.subr.mxu0 0.0
          %464 = vmatpush1.msra.mxu0 0.0
          %465 = vmatprep.subr.mxu0 0.0
          %466 = vmatpush1.msra.mxu0 0.0
          %467 = vmatprep.subr.mxu0 0.0
          %468 = vmatpush1.msra.mxu0 0.0
          %469 = vmatprep.subr.mxu0 0.0
          %470 = vmatpush1.msra.mxu0 0.0
          %471 = vmatprep.subr.mxu0 0.0
          %472 = vmatpush1.msra.mxu0 0.0
          %473 = vmatprep.subr.mxu0 0.0
          %474 = vmatpush1.msra.mxu0 0.0
          %475 = vmatprep.subr.mxu0 0.0
          %476 = vmatpush1.msra.mxu0 0.0
          %477 = vmatprep.subr.mxu0 0.0
          %478 = vmatpush1.msra.mxu0 0.0
          %479 = vmatprep.subr.mxu0 0.0
          %480 = vmatpush1.msra.mxu0 0.0
          %481 = vmatprep.subr.mxu0 0.0
          %482 = vmatpush1.msra.mxu0 0.0
          %483 = vmatprep.subr.mxu0 0.0
          %484 = vmatpush1.msra.mxu0 0.0
          %485 = vmatprep.subr.mxu0 0.0
          %486 = vmatpush1.msra.mxu0 0.0
          %487 = vmatprep.subr.mxu0 0.0
          %488 = vmatpush1.msra.mxu0 0.0
          %489 = vmatprep.subr.mxu0 0.0
          %490 = vmatpush1.msra.mxu0 0.0
          %491 = vmatprep.subr.mxu0 0.0
          %492 = vmatpush1.msra.mxu0 0.0
          %493 = vmatprep.subr.mxu0 0.0
          %494 = vmatpush1.msra.mxu0 0.0
          %495 = vmatprep.subr.mxu0 0.0
          %496 = vmatpush1.msra.mxu0 0.0
          %497 = vmatprep.subr.mxu0 0.0
          %498 = vmatpush1.msra.mxu0 0.0
          %499 = vmatprep.subr.mxu0 0.0
          %500 = vmatpush1.msra.mxu0 0.0
          %501 = vmatprep.subr.mxu0 0.0
          %502 = vmatpush1.msra.mxu0 0.0
          %503 = vmatprep.subr.mxu0 0.0
          %504 = vmatpush1.msra.mxu0 0.0
          %505 = vmatprep.subr.mxu0 0.0
          %506 = vmatpush1.msra.mxu0 0.0
          %507 = vmatprep.subr.mxu0 0.0
          %508 = vmatpush1.msra.mxu0 0.0
          %509 = vmatprep.mubr.f32.mxu0 0.0
          %510 = vmatmul.mubr.f32.gmra.mrb[0].mxu0 %v422
          %v511 = vpop.f32.mrb[0].mxu0
          %v512 = vadd.f32 0.0, %v511
          %v513 = vpop.f32.mrb[0].mxu0
          %514 = vmatprep.mubr.f32.mxu0 0.0
          %515 = vmatmul.mubr.f32.gmra.mrb[0].mxu0 %v425
          %v516 = vpop.f32.mrb[0].mxu0
          %v517 = vadd.f32 0.0, %v516
          %v518 = vpop.f32.mrb[0].mxu0
          %519 = vmatprep.mubr.f32.mxu0 0.0
          %520 = vmatmul.mubr.f32.gmra.mrb[0].mxu0 %v428
          %v521 = vpop.f32.mrb[0].mxu0
          %v522 = vadd.f32 0.0, %v521
          %v523 = vpop.f32.mrb[0].mxu0
          %524 = vmatprep.mubr.f32.mxu0 0.0
          %525 = vmatmul.mubr.f32.gmra.mrb[0].mxu0 %v431
          %v526 = vpop.f32.mrb[0].mxu0
          %v527 = vadd.f32 0.0, %v526
          %v528 = vpop.f32.mrb[0].mxu0
          %529 = vmatprep.mubr.f32.mxu0 0.0
          %530 = vmatmul.mubr.f32.gmra.mrb[0].mxu0 %v434
          %v531 = vpop.f32.mrb[0].mxu0
          %v532 = vadd.f32 0.0, %v531
          %v533 = vpop.f32.mrb[0].mxu0
          %534 = vmatprep.mubr.f32.mxu0 0.0
          %535 = vmatmul.mubr.f32.gmra.mrb[0].mxu0 %v437
          %v536 = vpop.f32.mrb[0].mxu0
          %v537 = vadd.f32 0.0, %v536
          %v538 = vpop.f32.mrb[0].mxu0
          %539 = vmatprep.mubr.f32.mxu0 0.0
          %540 = vmatmul.mubr.f32.gmra.mrb[0].mxu0 %v440
          %v541 = vpop.f32.mrb[0].mxu0
          %v542 = vadd.f32 0.0, %v541
          %v543 = vpop.f32.mrb[0].mxu0
          %544 = vmatprep.mubr.f32.mxu0 0.0
          %545 = vmatmul.mubr.f32.gmra.mrb[0].mxu0 %v443
          %v546 = vpop.f32.mrb[0].mxu0
          %v547 = vadd.f32 0.0, %v546
          %v548 = vpop.f32.mrb[0].mxu0
          %549 = vdwg.mxu0
          %v550 = vld [vmem:[%s383] sm:$0xff]
          %v552 = vcombine.high %v550, %v550
          %v554 = vunpack.c.l.s4 1966171168
          %v555 = vunpack.c.0.s8 %v554
          %v556 = vlaneseq
          %v557 = vshrl.u32 %v556, 7
          %v558 = vsub.s32 %v555, %v557
          %v559 = vrot.slane %v550, %v558
          %v561 = vunpack.c.l.s4 1966171168
          %v562 = vunpack.c.0.s8 %v561
          %v563 = vlaneseq
          %v564 = vshrl.u32 %v563, 7
          %v565 = vsub.s32 %v562, %v564
          %v566 = vrot.slane %v552, %v565
          %v567 = vcombine.high %v559, %v559
          %v568 = vcombine.high %v566, %v566
          %v570 = vunpack.c.l.s4 1966171168
          %v571 = vunpack.c.0.s8 %v570
          %v572 = vlaneseq
          %v573 = vshrl.u32 %v572, 7
          %v574 = vsub.s32 %v571, %v573
          %v575 = vrot.slane %v559, %v574
          %v577 = vunpack.c.l.s4 1966171168
          %v578 = vunpack.c.0.s8 %v577
          %v579 = vlaneseq
          %v580 = vshrl.u32 %v579, 7
          %v581 = vsub.s32 %v578, %v580
          %v582 = vrot.slane %v566, %v581
          %v584 = vunpack.c.l.s4 1966171168
          %v585 = vunpack.c.0.s8 %v584
          %v586 = vlaneseq
          %v587 = vshrl.u32 %v586, 7
          %v588 = vsub.s32 %v585, %v587
          %v589 = vrot.slane %v567, %v588
          %v591 = vunpack.c.l.s4 1966171168
          %v592 = vunpack.c.0.s8 %v591
          %v593 = vlaneseq
          %v594 = vshrl.u32 %v593, 7
          %v595 = vsub.s32 %v592, %v594
          %v596 = vrot.slane %v568, %v595
          %v597 = vcombine.high %v575, %v575
          %v598 = vcombine.high %v582, %v582
          %v599 = vcombine.high %v589, %v589
          %v600 = vcombine.high %v596, %v596
          %v601 = vlaneseq
          %v602 = vshrl.u32 %v601, 7
          %v603 = vsub.s32 0, %v602
          %v604 = vrot.slane %v575, %v603
          %v605 = vlaneseq
          %v606 = vshrl.u32 %v605, 7
          %v607 = vsub.s32 0, %v606
          %v608 = vrot.slane %v589, %v607
          %v609 = vlaneseq
          %v610 = vshrl.u32 %v609, 7
          %v611 = vsub.s32 0, %v610
          %v612 = vrot.slane %v597, %v611
          %v613 = vlaneseq
          %v614 = vshrl.u32 %v613, 7
          %v615 = vsub.s32 0, %v614
          %v616 = vrot.slane %v599, %v615
          %v617 = vlaneseq
          %v618 = vshrl.u32 %v617, 7
          %v619 = vsub.s32 0, %v618
          %v620 = vrot.slane %v582, %v619
          %v621 = vlaneseq
          %v622 = vshrl.u32 %v621, 7
          %v623 = vsub.s32 0, %v622
          %v624 = vrot.slane %v596, %v623
          %v625 = vlaneseq
          %v626 = vshrl.u32 %v625, 7
          %v627 = vsub.s32 0, %v626
          %v628 = vrot.slane %v598, %v627
          %v629 = vlaneseq
          %v630 = vshrl.u32 %v629, 7
          %v631 = vsub.s32 0, %v630
          %v632 = vrot.slane %v600, %v631
          %v641 = vadd.f32 %v512, %v604
          %v642 = vadd.f32 %v517, %v608
          %v643 = vadd.f32 %v522, %v612
          %v644 = vadd.f32 %v527, %v616
          %v645 = vadd.f32 %v532, %v620
          %v646 = vadd.f32 %v537, %v624
          %v647 = vadd.f32 %v542, %v628
          %v648 = vadd.f32 %v547, %v632
          %v649 = vld [vmem:[%s387] sm:$0xff]
          %v650 = vadd.f32 %v641, %v649
          %v651 = vadd.f32 %v642, %v649
          %v652 = vadd.f32 %v643, %v649
          %v653 = vadd.f32 %v644, %v649
          %v654 = vadd.f32 %v645, %v649
          %v655 = vadd.f32 %v646, %v649
          %v656 = vadd.f32 %v647, %v649
          %v657 = vadd.f32 %v648, %v649
          %v658 = vmax.f32 %v650, 0.0
          %v659 = vmax.f32 %v651, 0.0
          %v660 = vmax.f32 %v652, 0.0
          %v661 = vmax.f32 %v653, 0.0
          %v662 = vmax.f32 %v654, 0.0
          %v663 = vmax.f32 %v655, 0.0
          %v664 = vmax.f32 %v656, 0.0
          %v665 = vmax.f32 %v657, 0.0
          %666 = vst [vmem:[#allocation2] sm:$0xff] %v658
          %667 = vst [vmem:[#allocation2 + $0x8] sm:$0xff] %v659
          %668 = vst [vmem:[#allocation2 + $0x10] sm:$0xff] %v660
          %669 = vst [vmem:[#allocation2 + $0x18] sm:$0xff] %v661
          %670 = vst [vmem:[#allocation2 + $0x20] sm:$0xff] %v662
          %671 = vst [vmem:[#allocation2 + $0x28] sm:$0xff] %v663
          %672 = vst [vmem:[#allocation2 + $0x30] sm:$0xff] %v664
          %673 = vst [vmem:[#allocation2 + $0x38] sm:$0xff] %v665
          %674 = vst [vmem:[%s376] sm:$0xff] %v658
          %675 = vst [vmem:[%s376 + $0x8] sm:$0xff] %v659
          %676 = vst [vmem:[%s376 + $0x10] sm:$0xff] %v660
          %677 = vst [vmem:[%s376 + $0x18] sm:$0xff] %v661
          %678 = vst [vmem:[%s376 + $0x20] sm:$0xff] %v662
          %679 = vst [vmem:[%s376 + $0x28] sm:$0xff] %v663
          %680 = vst [vmem:[%s376 + $0x30] sm:$0xff] %v664
          %681 = vst [vmem:[%s376 + $0x38] sm:$0xff] %v665
        $region48: #{joiner_biasing_forward.1} parent=43 // pred_fallthru
          _
        %v682 = vld [vmem:[#allocation2] sm:$0xff]
        %v683 = vld [vmem:[#allocation2 + $0x8] sm:$0xff]
        %v684 = vld [vmem:[#allocation2 + $0x10] sm:$0xff]
        %v685 = vld [vmem:[#allocation2 + $0x18] sm:$0xff]
        %v686 = vld [vmem:[#allocation2 + $0x20] sm:$0xff]
        %v687 = vld [vmem:[#allocation2 + $0x28] sm:$0xff]
        %v688 = vld [vmem:[#allocation2 + $0x30] sm:$0xff]
        %v689 = vld [vmem:[#allocation2 + $0x38] sm:$0xff]
        %v690 = vld [vmem:[%s401] sm:$0xff]
        %v691 = vld [vmem:[%s401 + $0x8] sm:$0xff]
        %v692 = vld [vmem:[%s401 + $0x10] sm:$0xff]
        %v693 = vld [vmem:[%s401 + $0x18] sm:$0xff]
        %v694 = vld [vmem:[%s401 + $0x20] sm:$0xff]
        %v695 = vld [vmem:[%s401 + $0x28] sm:$0xff]
        %v696 = vld [vmem:[%s401 + $0x30] sm:$0xff]
        %v697 = vld [vmem:[%s401 + $0x38] sm:$0xff]
        %v698 = vld [vmem:[%s401 + $0x40] sm:$0xff]
        %v699 = vld [vmem:[%s401 + $0x48] sm:$0xff]
        %v700 = vld [vmem:[%s401 + $0x50] sm:$0xff]
        %v701 = vld [vmem:[%s401 + $0x58] sm:$0xff]
        %v702 = vld [vmem:[%s401 + $0x60] sm:$0xff]
        %v703 = vld [vmem:[%s401 + $0x68] sm:$0xff]
        %v704 = vld [vmem:[%s401 + $0x70] sm:$0xff]
        %v705 = vld [vmem:[%s401 + $0x78] sm:$0xff]
        %v706 = vld [vmem:[%s404] sm:$0x1]
        %v708 = vlaneseq
        %v709 = vshrl.u32 %v708, 7
        %v710 = vsub.s32 0, %v709
        %v711 = vrot.slane %v706, %v710
        %713 = vmatprep.subr.mxu0 0.0
        %714 = vmatpush1.msra.mxu0 %v690
        %715 = vmatprep.subr.mxu0 0.0
        %716 = vmatpush1.msra.mxu0 %v691
        %717 = vmatprep.subr.mxu0 0.0
        %718 = vmatpush1.msra.mxu0 %v692
        %719 = vmatprep.subr.mxu0 0.0
        %720 = vmatpush1.msra.mxu0 %v693
        %721 = vmatprep.subr.mxu0 0.0
        %722 = vmatpush1.msra.mxu0 %v694
        %723 = vmatprep.subr.mxu0 0.0
        %724 = vmatpush1.msra.mxu0 %v695
        %725 = vmatprep.subr.mxu0 0.0
        %726 = vmatpush1.msra.mxu0 %v696
        %727 = vmatprep.subr.mxu0 0.0
        %728 = vmatpush1.msra.mxu0 %v697
        %729 = vmatprep.subr.mxu0 0.0
        %730 = vmatpush1.msra.mxu0 %v698
        %731 = vmatprep.subr.mxu0 0.0
        %732 = vmatpush1.msra.mxu0 %v699
        %733 = vmatprep.subr.mxu0 0.0
        %734 = vmatpush1.msra.mxu0 %v700
        %735 = vmatprep.subr.mxu0 0.0
        %736 = vmatpush1.msra.mxu0 %v701
        %737 = vmatprep.subr.mxu0 0.0
        %738 = vmatpush1.msra.mxu0 %v702
        %739 = vmatprep.subr.mxu0 0.0
        %740 = vmatpush1.msra.mxu0 %v703
        %741 = vmatprep.subr.mxu0 0.0
        %742 = vmatpush1.msra.mxu0 %v704
        %743 = vmatprep.subr.mxu0 0.0
        %744 = vmatpush1.msra.mxu0 %v705
        %745 = vmatprep.subr.mxu0 0.0
        %746 = vmatpush1.msra.mxu0 0.0
        %747 = vmatprep.subr.mxu0 0.0
        %748 = vmatpush1.msra.mxu0 0.0
        %749 = vmatprep.subr.mxu0 0.0
        %750 = vmatpush1.msra.mxu0 0.0
        %751 = vmatprep.subr.mxu0 0.0
        %752 = vmatpush1.msra.mxu0 0.0
        %753 = vmatprep.subr.mxu0 0.0
        %754 = vmatpush1.msra.mxu0 0.0
        %755 = vmatprep.subr.mxu0 0.0
        %756 = vmatpush1.msra.mxu0 0.0
        %757 = vmatprep.subr.mxu0 0.0
        %758 = vmatpush1.msra.mxu0 0.0
        %759 = vmatprep.subr.mxu0 0.0
        %760 = vmatpush1.msra.mxu0 0.0
        %761 = vmatprep.subr.mxu0 0.0
        %762 = vmatpush1.msra.mxu0 0.0
        %763 = vmatprep.subr.mxu0 0.0
        %764 = vmatpush1.msra.mxu0 0.0
        %765 = vmatprep.subr.mxu0 0.0
        %766 = vmatpush1.msra.mxu0 0.0
        %767 = vmatprep.subr.mxu0 0.0
        %768 = vmatpush1.msra.mxu0 0.0
        %769 = vmatprep.subr.mxu0 0.0
        %770 = vmatpush1.msra.mxu0 0.0
        %771 = vmatprep.subr.mxu0 0.0
        %772 = vmatpush1.msra.mxu0 0.0
        %773 = vmatprep.subr.mxu0 0.0
        %774 = vmatpush1.msra.mxu0 0.0
        %775 = vmatprep.subr.mxu0 0.0
        %776 = vmatpush1.msra.mxu0 0.0
        %777 = vmatprep.mubr.f32.mxu0 0.0
        %778 = vmatmul.mubr.f32.gmra.mrb[0].mxu0 %v682
        %v779 = vpop.f32.mrb[0].mxu0
        %v780 = vadd.f32 %v711, %v779
        %v781 = vpop.f32.mrb[0].mxu0
        %782 = vmatprep.mubr.f32.mxu0 0.0
        %783 = vmatmul.mubr.f32.gmra.mrb[0].mxu0 %v683
        %v784 = vpop.f32.mrb[0].mxu0
        %v785 = vadd.f32 %v711, %v784
        %v786 = vpop.f32.mrb[0].mxu0
        %787 = vmatprep.mubr.f32.mxu0 0.0
        %788 = vmatmul.mubr.f32.gmra.mrb[0].mxu0 %v684
        %v789 = vpop.f32.mrb[0].mxu0
        %v790 = vadd.f32 %v711, %v789
        %v791 = vpop.f32.mrb[0].mxu0
        %792 = vmatprep.mubr.f32.mxu0 0.0
        %793 = vmatmul.mubr.f32.gmra.mrb[0].mxu0 %v685
        %v794 = vpop.f32.mrb[0].mxu0
        %v795 = vadd.f32 %v711, %v794
        %v796 = vpop.f32.mrb[0].mxu0
        %797 = vmatprep.mubr.f32.mxu0 0.0
        %798 = vmatmul.mubr.f32.gmra.mrb[0].mxu0 %v686
        %v799 = vpop.f32.mrb[0].mxu0
        %v800 = vadd.f32 %v711, %v799
        %v801 = vpop.f32.mrb[0].mxu0
        %802 = vmatprep.mubr.f32.mxu0 0.0
        %803 = vmatmul.mubr.f32.gmra.mrb[0].mxu0 %v687
        %v804 = vpop.f32.mrb[0].mxu0
        %v805 = vadd.f32 %v711, %v804
        %v806 = vpop.f32.mrb[0].mxu0
        %807 = vmatprep.mubr.f32.mxu0 0.0
        %808 = vmatmul.mubr.f32.gmra.mrb[0].mxu0 %v688
        %v809 = vpop.f32.mrb[0].mxu0
        %v810 = vadd.f32 %v711, %v809
        %v811 = vpop.f32.mrb[0].mxu0
        %812 = vmatprep.mubr.f32.mxu0 0.0
        %813 = vmatmul.mubr.f32.gmra.mrb[0].mxu0 %v689
        %v814 = vpop.f32.mrb[0].mxu0
        %v815 = vadd.f32 %v711, %v814
        %v816 = vpop.f32.mrb[0].mxu0
        %817 = vdwg.mxu0
        %818 = vst [vmem:[%s369] sm:$0xff] %v780
        %819 = vst [vmem:[%s369 + $0x8] sm:$0xff] %v785
        %820 = vst [vmem:[%s369 + $0x10] sm:$0xff] %v790
        %821 = vst [vmem:[%s369 + $0x18] sm:$0xff] %v795
        %822 = vst [vmem:[%s369 + $0x20] sm:$0xff] %v800
        %823 = vst [vmem:[%s369 + $0x28] sm:$0xff] %v805
        %824 = vst [vmem:[%s369 + $0x30] sm:$0xff] %v810
        %825 = vst [vmem:[%s369 + $0x38] sm:$0xff] %v815
        %s826 = sand.u32 %s211, 1
        %s827 = scalar_lea.sflag [#allocation4], %s826
        %s828 = sand.u32 %s211, 1
        %s829 = smul.addr %s828, 64
        %s830 = scalar_lea.vmem [#allocation3], %s829
        %s831 = sand.u32 %s239, 1
        %s832 = scalar_lea.sflag [#allocation6], %s831
        %s833 = sand.u32 %s239, 1
        %s834 = smul.addr %s833, 64
        %s835 = scalar_lea.vmem [#allocation5], %s834
        // Predicated region
        $region49: #{joiner_biasing_forward.1} parent=43 // pred_check
          %p836 = pneg %p221
        $region50: #{joiner_biasing_forward.1} parent=43 // pred_check_branch
          %838 = sbr.rel (%p836) target = $region52
        $region51: #{joiner_biasing_forward.1} parent=43 // pred_region
          %s839 = smul.u32 8, %s31
          %s841 = ssub.s32 1024, 1024
          %842 = vsyncadd %s827, %s841
          %s843 = sadd.s32 %s32, %s839
          %s844 = smul.addr %s30, 8
          %s845 = sadd.s32 %s843, %s844
          %s846 = smul.addr %s845, 128
          %s847 = scalar_lea.hbm %s6, %s846
          %s848 = sshll.u32 %s830, 4
          %s849 = int_to_ptr.vmem [resolvable:$true] %s848
          %854 = dma.vmem_to_hbm [thread:$0]  %s849, 1024, %s847, %s827, 128, 128, 8
        $region52: #{joiner_biasing_forward.1} parent=43 // pred_fallthru
          _
        // Predicated region
        $region53: #{joiner_biasing_forward.1} parent=43 // pred_check
          %p855 = pneg %p249
        $region54: #{joiner_biasing_forward.1} parent=43 // pred_check_branch
          %857 = sbr.rel (%p855) target = $region56
        $region55: #{joiner_biasing_forward.1} parent=43 // pred_region
          %s858 = smul.u32 8, %s31
          %s860 = ssub.s32 1024, 1024
          %861 = vsyncadd %s832, %s860
          %s862 = smul.addr %s30, 8
          %s863 = sadd.s32 %s858, %s862
          %s864 = smul.addr %s863, 128
          %s865 = scalar_lea.hbm %s7, %s864
          %s866 = sshll.u32 %s835, 4
          %s867 = int_to_ptr.vmem [resolvable:$true] %s866
          %872 = dma.vmem_to_hbm [thread:$0]  %s867, 1024, %s865, %s832, 128, 128, 8
        $region56: #{joiner_biasing_forward.1} parent=43 // pred_fallthru
          _
      $region44: #{joiner_biasing_forward.1} parent=5 // pred_fallthru
        _
      %p873 = scmp.le.s32.totalorder 2, %s20
      // Predicated region
      $region57: #{joiner_biasing_forward.1} parent=5 // pred_check
        %p874 = pneg %p873
      $region58: #{joiner_biasing_forward.1} parent=5 // pred_check_branch
        %876 = sbr.rel (%p874) target = $region60
      $region59: #{joiner_biasing_forward.1} parent=5 // pred_region
        %s877 = ssub.s32 %s20, 2
        // Predicated region
        $region61: #{joiner_biasing_forward.1} parent=59 // pred_check
          %p878 = pneg %p227
        $region62: #{joiner_biasing_forward.1} parent=59 // pred_check_branch
          %880 = sbr.rel (%p878) target = $region64
        $region63: #{joiner_biasing_forward.1} parent=59 // pred_region
          %s881 = sand.u32 %s212, 1
          %s882 = scalar_lea.sflag [#allocation4], %s881
          %s883 = sand.u32 %s212, 1
          %s884 = smul.addr %s883, 64
          %s885 = scalar_lea.vmem [#allocation3], %s884
          %886 = dma.done %s882, 1024
        $region64: #{joiner_biasing_forward.1} parent=59 // pred_fallthru
          _
        // Predicated region
        $region65: #{joiner_biasing_forward.1} parent=59 // pred_check
          %p887 = pneg %p255
        $region66: #{joiner_biasing_forward.1} parent=59 // pred_check_branch
          %889 = sbr.rel (%p887) target = $region68
        $region67: #{joiner_biasing_forward.1} parent=59 // pred_region
          %s890 = sand.u32 %s240, 1
          %s891 = scalar_lea.sflag [#allocation6], %s890
          %s892 = sand.u32 %s240, 1
          %s893 = smul.addr %s892, 64
          %s894 = scalar_lea.vmem [#allocation5], %s893
          %895 = dma.done %s891, 1024
        $region68: #{joiner_biasing_forward.1} parent=59 // pred_fallthru
          _
      $region60: #{joiner_biasing_forward.1} parent=5 // pred_fallthru
        _
    $region6: #{joiner_biasing_forward.1} parent=1 // loop_footer
      %s24 = sadd.s32 1, %s20
    $region7: #{joiner_biasing_forward.1} parent=1 // loop_footer_branch
      %19 = sbr.rel target = $region3
    $region8: #{joiner_biasing_forward.1} parent=1 // loop_exit
      _
    %896 = vsyncpa [#allocation4], 1
    %s897 = scalar_lea.sflag [#allocation4], 1
    %898 = vsyncpa %s897, 1
    %899 = vsyncpa [#allocation6], 1
    %s900 = scalar_lea.sflag [#allocation6], 1
    %901 = vsyncpa %s900, 1

</llo_original>
